<compile_context>
chip_gen: v5e
topology: v5e:2x2
jax: 0.10.0
libtpu: 0.0.40
codegen_flags: <defaults>
</compile_context>

<pallas_src>
import jax
import jax.numpy as jnp
from jax.experimental import pallas as pl
from jax.experimental.pallas import tpu as pltpu


# --------------------------------------------------------------------------- #
# Kernel
# --------------------------------------------------------------------------- #
def attention_kernel(h_ref, enc_ref, mask_ref,
                     wt_ref, wb_ref, ut_ref, ub_ref, v_ref,
                     out_ref):
    # h_ref    : (TILE_B, H)  f32   decoder hidden states for this batch tile
    # enc_ref  : (TILE_B, S, 2H) bf16   batch-major encoder outputs
    # mask_ref : (TILE_B, S)  int32 (nonzero -> masked), lane-dense
    # wt_ref   : (H, H)  bf16  W^T       wb_ref : (1, H) f32  W bias
    # ut_ref   : (2H, H) bf16  U^T       ub_ref : (1, H) f32  U bias
    # v_ref    : (1, H)  f32   v weight row (Linear(H, 1, bias=False).weight)
    # out_ref  : (TILE_B, S)  f32   softmax attention weights (lane-dense)
    tb, H = h_ref.shape
    _, S, D2 = enc_ref.shape

    # W(hidden): bf16 operands on the MXU, f32 accumulate; broadcast over S
    # below (== unsqueeze(1).repeat(1, src_len, 1) in PyTorch).
    h_bf = h_ref[...].astype(jnp.bfloat16)                               # (tb, H)
    hW = jnp.dot(h_bf, wt_ref[...],
                 preferred_element_type=jnp.float32) + wb_ref[...]      # (tb, H) f32

    # U(encoder_outputs): fold all tb*S rows into one MXU matmul (bf16 in,
    # f32 out).  tb is a multiple of 8 so the reshape is a free relayout.
    enc = enc_ref[...]                                                   # (tb, S, 2H) bf16
    eU = jnp.dot(enc.reshape(tb * S, D2), ut_ref[...],
                 preferred_element_type=jnp.float32)                     # (tb*S, H) f32
    eU = eU.reshape(tb, S, H) + ub_ref[...]                              # (tb, S, H) f32

    # tanh / bias adds stay in f32 (v5e-safe).
    energy = jnp.tanh(eU + hW[:, None, :])                               # (tb, S, H) f32

    # v(energy).squeeze(2): VPU multiply + lane reduction over H
    # (avoids an N=1 MXU matmul and any score transpose -- already lane-dense).
    scores = jnp.sum(energy * v_ref[...], axis=-1)                       # (tb, S) f32

    # masked_fill(mask, -1e10)
    scores = jnp.where(mask_ref[...] != 0, jnp.float32(-1.0e10), scores)

    # softmax over src_len (lanes); EXACT normalization so rows sum to 1.
    m = jnp.max(scores, axis=-1, keepdims=True)                          # (tb, 1)
    e = jnp.exp(scores - m)
    denom = jnp.sum(e, axis=-1, keepdims=True)                           # (tb, 1)
    out_ref[...] = e / denom


# --------------------------------------------------------------------------- #
# Tiling / VMEM budgeting helpers
# --------------------------------------------------------------------------- #
def _round_up(x, m):
    return ((x + m - 1) // m) * m


def _vmem_capacity_bytes():
    """Per-core VMEM capacity; conservative v7x fallback off-device."""
    try:
        info = pltpu.get_tpu_info()
        cap = getattr(info, "vmem_capacity_bytes", None)
        if cap:
            return int(cap)
    except Exception:
        pass
    return 64 * 1024 * 1024  # v7x per-TensorCore VMEM (smallest current gen)


def _vmem_need_bytes(tile_b, S, H):
    """Generous estimate of kernel VMEM footprint for one batch tile."""
    d2 = 2 * H
    enc = 2 * tile_b * S * d2 * 2                       # double-buffered bf16 enc block
    io = 2 * (tile_b * H * 4 + 2 * tile_b * S * 4)      # hidden + mask + out blocks
    wgt = 2 * ((H * H + d2 * H) * 2 + 3 * H * 4)        # bf16 weights + f32 biases/v
    tmp = 3 * tile_b * S * H * 4 + tile_b * S * d2 * 2  # eU/energy f32 + reshape slack
    return enc + io + wgt + tmp


def _select_tile_b(b_pad, S, H, budget):
    """Largest sublane-aligned batch tile that fits the VMEM budget; keep the
    batch grid >= 2 steps so both v7x TensorCores get work under "parallel"."""
    candidates = [t for t in (256, 128, 64, 32, 16, 8) if t <= max(b_pad, 8)]
    tile_b = 8
    for t in candidates:
        if _vmem_need_bytes(t, S, H) <= budget:
            tile_b = t
            break
    if b_pad >= 16:
        while tile_b > 8 and (b_pad + tile_b - 1) // tile_b < 2:
            tile_b //= 2
    return max(8, tile_b)


# --------------------------------------------------------------------------- #
# Wrapper
# --------------------------------------------------------------------------- #
def attention_forward(hidden, encoder_outputs, mask, params, *, tile_b=None):
    """hidden [B,H] f32, encoder_outputs [S,B,2H] f32, mask [B,S] bool -> [B,S] f32."""
    S, B, D2 = encoder_outputs.shape
    H = hidden.shape[1]
    assert D2 == 2 * H

    capacity = _vmem_capacity_bytes()
    budget = capacity // 2                               # leave spill/weight headroom

    b8 = _round_up(max(B, 8), 8)
    if tile_b is None:
        tile_b = _select_tile_b(b8, S, H, budget)
    tile_b = max(8, _round_up(min(tile_b, b8), 8))
    b_pad = _round_up(B, tile_b)

    # Batch-major bf16 encoder layout (hoisted out of the per-decoder-step loop
    # in real use): contiguous per-tile enc DMA, no in-kernel score transpose.
    enc_bm = jnp.transpose(encoder_outputs, (1, 0, 2)).astype(jnp.bfloat16)   # [B, S, 2H]

    mask_i32 = mask.astype(jnp.int32)                                         # [B, S]
    hidden_f32 = hidden.astype(jnp.float32)

    if b_pad > B:
        pad = b_pad - B
        hidden_f32 = jnp.pad(hidden_f32, ((0, pad), (0, 0)))
        enc_bm = jnp.pad(enc_bm, ((0, pad), (0, 0), (0, 0)))
        mask_i32 = jnp.pad(mask_i32, ((0, pad), (0, 0)))

    wt = params["W_w"].T.astype(jnp.bfloat16)                                 # [H, H]
    wb = params["W_b"][None, :].astype(jnp.float32)                           # [1, H]
    ut = params["U_w"].T.astype(jnp.bfloat16)                                 # [2H, H]
    ub = params["U_b"][None, :].astype(jnp.float32)                           # [1, H]
    v_row = params["v_w"].astype(jnp.float32)                                 # [1, H]

    need = _vmem_need_bytes(tile_b, S, H)
    vmem_limit = int(min(capacity, max(2 * need, 32 * 1024 * 1024)))

    grid = (b_pad // tile_b,)

    out = pl.pallas_call(
        attention_kernel,
        out_shape=jax.ShapeDtypeStruct((b_pad, S), jnp.float32),
        grid_spec=pltpu.PrefetchScalarGridSpec(
            num_scalar_prefetch=0,
            grid=grid,
            in_specs=[
                pl.BlockSpec((tile_b, H), lambda i: (i, 0)),          # hidden tile
                pl.BlockSpec((tile_b, S, D2), lambda i: (i, 0, 0)),   # enc tile (batch-major, bf16)
                pl.BlockSpec((tile_b, S), lambda i: (i, 0)),          # mask tile (lane-dense)
                pl.BlockSpec((H, H), lambda i: (0, 0)),               # W^T   (constant -> hoisted)
                pl.BlockSpec((1, H), lambda i: (0, 0)),               # W bias
                pl.BlockSpec((D2, H), lambda i: (0, 0)),              # U^T
                pl.BlockSpec((1, H), lambda i: (0, 0)),               # U bias
                pl.BlockSpec((1, H), lambda i: (0, 0)),               # v row
            ],
            out_specs=pl.BlockSpec((tile_b, S), lambda i: (i, 0)),    # lane-dense output
        ),
        compiler_params=pltpu.CompilerParams(
            dimension_semantics=("parallel",),
            vmem_limit_bytes=vmem_limit),
    )(hidden_f32, enc_bm, mask_i32, wt, wb, ut, ub, v_row)

    return out[:B] if b_pad > B else out


# --------------------------------------------------------------------------- #
# Pure-JAX reference (mirrors the PyTorch forward exactly, f32 throughout)
# --------------------------------------------------------------------------- #
def attention_ref(hidden, encoder_outputs, mask, params):
    S = encoder_outputs.shape[0]
    h_rep = jnp.repeat(hidden[:, None, :], S, axis=1)                # [B, S, H]
    enc = jnp.transpose(encoder_outputs, (1, 0, 2))                  # [B, S, 2H]
    energy = jnp.tanh(h_rep @ params["W_w"].T + params["W_b"]
                      + enc @ params["U_w"].T + params["U_b"])       # [B, S, H]
    att = (energy @ params["v_w"].T)[:, :, 0]                        # [B, S]
    att = jnp.where(mask, -1.0e10, att)
    return jax.nn.softmax(att, axis=1)


if __name__ == "__main__":
    # Small shapes consistent with the module; B=16 with TILE_B=8 keeps blocks
    # sublane-aligned and gives a 2-step "parallel" grid (both v7x TensorCores).
    B, S, H = 16, 16, 32
    key = jax.random.PRNGKey(0)
    k = jax.random.split(key, 8)

    # Deterministic synthetic parameters (PyTorch Linear shapes).
    params = {
        "v_w": jax.random.normal(k[0], (1, H), jnp.float32) * 0.1,        # Linear(H, 1, bias=False)
        "W_w": jax.random.normal(k[1], (H, H), jnp.float32) * 0.1,        # Linear(H, H)
        "W_b": jax.random.normal(k[2], (H,), jnp.float32) * 0.1,
        "U_w": jax.random.normal(k[3], (H, 2 * H), jnp.float32) * 0.1,    # Linear(2H, H)
        "U_b": jax.random.normal(k[4], (H,), jnp.float32) * 0.1,
    }

    hidden = jax.random.normal(k[5], (B, H), jnp.float32)
    encoder_outputs = jax.random.normal(k[6], (S, B, 2 * H), jnp.float32)
    # Padding-style mask: mask out tail positions per batch element
    # (every row keeps at least one valid position).
    lengths = jax.random.randint(k[7], (B,), 1, S + 1).astype(jnp.int32)
    mask = jnp.arange(S)[None, :] >= lengths[:, None]                 # [B, S] bool

    out = attention_forward(hidden, encoder_outputs, mask, params)
    out = jax.block_until_ready(out)

    ref = attention_ref(hidden, encoder_outputs, mask, params)
    assert out.shape == (B, S)
    # bf16 MXU operands -> ~1e-2 tolerance on the attention weights.
    assert jnp.allclose(out, ref, atol=1e-2, rtol=1e-2), "Pallas output mismatch vs reference"
    # Exact in-kernel normalization -> rows sum to 1 (up to f32 rounding).
    assert jnp.allclose(jnp.sum(out, axis=1), 1.0, atol=1e-3)

    print("KERNEL_OK")
</pallas_src>

<mosaic_0001>
module attributes {stable_mosaic.version = 11 : i64} {
  func.func @attention_kernel(%arg0: i32, %arg1: memref<8x32xf32, #tpu.memory_space<vmem>>, %arg2: memref<8x16x64xbf16, #tpu.memory_space<vmem>>, %arg3: memref<8x16xi32, #tpu.memory_space<vmem>>, %arg4: memref<32x32xbf16, #tpu.memory_space<vmem>>, %arg5: memref<1x32xf32, #tpu.memory_space<vmem>>, %arg6: memref<64x32xbf16, #tpu.memory_space<vmem>>, %arg7: memref<1x32xf32, #tpu.memory_space<vmem>>, %arg8: memref<1x32xf32, #tpu.memory_space<vmem>>, %arg9: memref<8x16xf32, #tpu.memory_space<vmem>>) attributes {dimension_semantics = [#tpu.dimension_semantics<parallel>], iteration_bounds = array<i64: 2>, scalar_prefetch = 0 : i64, scratch_operands = 0 : i64, tpu.core_type = #tpu.core_type<tc>, window_params = [{transform_indices = @transform_0, window_bounds = array<i64: 8, 32>}, {transform_indices = @transform_1, window_bounds = array<i64: 8, 16, 64>}, {transform_indices = @transform_2, window_bounds = array<i64: 8, 16>}, {pipeline_mode = #tpu.pipeline_mode<synchronous>, transform_indices = @transform_3, window_bounds = array<i64: 32, 32>}, {pipeline_mode = #tpu.pipeline_mode<synchronous>, transform_indices = @transform_4, window_bounds = array<i64: 1, 32>}, {pipeline_mode = #tpu.pipeline_mode<synchronous>, transform_indices = @transform_5, window_bounds = array<i64: 64, 32>}, {pipeline_mode = #tpu.pipeline_mode<synchronous>, transform_indices = @transform_6, window_bounds = array<i64: 1, 32>}, {pipeline_mode = #tpu.pipeline_mode<synchronous>, transform_indices = @transform_7, window_bounds = array<i64: 1, 32>}, {transform_indices = @transform_8, window_bounds = array<i64: 8, 16>}]} {
    %c0 = arith.constant 0 : index
    %c0_0 = arith.constant 0 : index
    %0 = vector.load %arg1[%c0, %c0_0] : memref<8x32xf32, #tpu.memory_space<vmem>>, vector<8x32xf32>
    %1 = arith.truncf %0 : vector<8x32xf32> to vector<8x32xbf16>
    %c0_1 = arith.constant 0 : index
    %c0_2 = arith.constant 0 : index
    %2 = vector.load %arg4[%c0_1, %c0_2] : memref<32x32xbf16, #tpu.memory_space<vmem>>, vector<32x32xbf16>
    %cst = arith.constant dense<0.000000e+00> : vector<8x32xf32>
    %3 = tpu.matmul %1, %2, %cst {dimension_numbers = #tpu.dot_dimension_numbers<[1], [0], [0], [1], [0, 0, 1, 1], [], []>} : vector<8x32xbf16>, vector<32x32xbf16>, vector<8x32xf32> -> vector<8x32xf32>
    %c0_3 = arith.constant 0 : index
    %c0_4 = arith.constant 0 : index
    %4 = vector.load %arg5[%c0_3, %c0_4] : memref<1x32xf32, #tpu.memory_space<vmem>>, vector<1x32xf32>
    %5 = vector.broadcast %4 : vector<1x32xf32> to vector<8x32xf32>
    %6 = arith.addf %3, %5 : vector<8x32xf32>
    %c0_5 = arith.constant 0 : index
    %c0_6 = arith.constant 0 : index
    %c0_7 = arith.constant 0 : index
    %7 = vector.load %arg2[%c0_5, %c0_6, %c0_7] : memref<8x16x64xbf16, #tpu.memory_space<vmem>>, vector<8x16x64xbf16>
    %8 = vector.shape_cast %7 : vector<8x16x64xbf16> to vector<128x64xbf16>
    %c0_8 = arith.constant 0 : index
    %c0_9 = arith.constant 0 : index
    %9 = vector.load %arg6[%c0_8, %c0_9] : memref<64x32xbf16, #tpu.memory_space<vmem>>, vector<64x32xbf16>
    %cst_10 = arith.constant dense<0.000000e+00> : vector<128x32xf32>
    %10 = tpu.matmul %8, %9, %cst_10 {dimension_numbers = #tpu.dot_dimension_numbers<[1], [0], [0], [1], [0, 0, 1, 1], [], []>} : vector<128x64xbf16>, vector<64x32xbf16>, vector<128x32xf32> -> vector<128x32xf32>
    %11 = vector.shape_cast %10 : vector<128x32xf32> to vector<8x16x32xf32>
    %c0_11 = arith.constant 0 : index
    %c0_12 = arith.constant 0 : index
    %12 = vector.load %arg7[%c0_11, %c0_12] : memref<1x32xf32, #tpu.memory_space<vmem>>, vector<1x32xf32>
    %13 = vector.shape_cast %12 : vector<1x32xf32> to vector<1x1x32xf32>
    %14 = vector.broadcast %13 : vector<1x1x32xf32> to vector<8x16x32xf32>
    %15 = arith.addf %11, %14 : vector<8x16x32xf32>
    %16 = vector.shape_cast %6 : vector<8x32xf32> to vector<8x1x32xf32>
    %17 = vector.broadcast %16 : vector<8x1x32xf32> to vector<8x16x32xf32>
    %18 = arith.addf %15, %17 : vector<8x16x32xf32>
    %19 = math.tanh %18 : vector<8x16x32xf32>
    %c0_13 = arith.constant 0 : index
    %c0_14 = arith.constant 0 : index
    %20 = vector.load %arg8[%c0_13, %c0_14] : memref<1x32xf32, #tpu.memory_space<vmem>>, vector<1x32xf32>
    %21 = vector.shape_cast %20 : vector<1x32xf32> to vector<1x1x32xf32>
    %22 = vector.broadcast %21 : vector<1x1x32xf32> to vector<8x16x32xf32>
    %23 = arith.mulf %19, %22 : vector<8x16x32xf32>
    %cst_15 = arith.constant dense<0.000000e+00> : vector<8x16xf32>
    %24 = vector.multi_reduction <add>, %23, %cst_15 [2] : vector<8x16x32xf32> to vector<8x16xf32>
    %c0_16 = arith.constant 0 : index
    %c0_17 = arith.constant 0 : index
    %25 = vector.load %arg3[%c0_16, %c0_17] : memref<8x16xi32, #tpu.memory_space<vmem>>, vector<8x16xi32>
    %c0_i32 = arith.constant 0 : i32
    %26 = vector.broadcast %c0_i32 : i32 to vector<8x16xi32>
    %27 = arith.cmpi ne, %25, %26 : vector<8x16xi32>
    %cst_18 = arith.constant -1.000000e+10 : f32
    %28 = vector.broadcast %cst_18 : f32 to vector<8x16xf32>
    %29 = arith.select %27, %28, %24 : vector<8x16xi1>, vector<8x16xf32>
    %cst_19 = arith.constant dense<0xFF800000> : vector<8xf32>
    %30 = vector.multi_reduction <maximumf>, %29, %cst_19 [1] : vector<8x16xf32> to vector<8xf32>
    %31 = vector.shape_cast %30 : vector<8xf32> to vector<8x1xf32>
    %32 = vector.broadcast %31 : vector<8x1xf32> to vector<8x16xf32>
    %33 = arith.subf %29, %32 : vector<8x16xf32>
    %34 = math.exp %33 : vector<8x16xf32>
    %cst_20 = arith.constant dense<0.000000e+00> : vector<8xf32>
    %35 = vector.multi_reduction <add>, %34, %cst_20 [1] : vector<8x16xf32> to vector<8xf32>
    %36 = vector.shape_cast %35 : vector<8xf32> to vector<8x1xf32>
    %37 = vector.broadcast %36 : vector<8x1xf32> to vector<8x16xf32>
    %38 = arith.divf %34, %37 : vector<8x16xf32>
    %c0_21 = arith.constant 0 : index
    %c0_22 = arith.constant 0 : index
    %39 = vector.load %arg9[%c0_21, %c0_22] : memref<8x16xf32, #tpu.memory_space<vmem>>, vector<8x16xf32>
    tpu.vector_store %arg9[%c0_21, %c0_22], %38 {strides = array<i32>} : memref<8x16xf32, #tpu.memory_space<vmem>>, vector<8x16xf32>,
    return
  }
  func.func @transform_0(%arg0: i32) -> (i32, i32) {
    %c0_i32 = arith.constant 0 : i32
    %c0_i32_0 = arith.constant 0 : i32
    return %arg0, %c0_i32 : i32, i32
  }
  func.func @transform_1(%arg0: i32) -> (i32, i32, i32) {
    %c0_i32 = arith.constant 0 : i32
    %c0_i32_0 = arith.constant 0 : i32
    %c0_i32_1 = arith.constant 0 : i32
    return %arg0, %c0_i32, %c0_i32_0 : i32, i32, i32
  }
  func.func @transform_2(%arg0: i32) -> (i32, i32) {
    %c0_i32 = arith.constant 0 : i32
    %c0_i32_0 = arith.constant 0 : i32
    return %arg0, %c0_i32 : i32, i32
  }
  func.func @transform_3(%arg0: i32) -> (i32, i32) {
    %c0_i32 = arith.constant 0 : i32
    %c0_i32_0 = arith.constant 0 : i32
    %c0_i32_1 = arith.constant 0 : i32
    return %c0_i32, %c0_i32_0 : i32, i32
  }
  func.func @transform_4(%arg0: i32) -> (i32, i32) {
    %c0_i32 = arith.constant 0 : i32
    %c0_i32_0 = arith.constant 0 : i32
    %c0_i32_1 = arith.constant 0 : i32
    return %c0_i32, %c0_i32_0 : i32, i32
  }
  func.func @transform_5(%arg0: i32) -> (i32, i32) {
    %c0_i32 = arith.constant 0 : i32
    %c0_i32_0 = arith.constant 0 : i32
    %c0_i32_1 = arith.constant 0 : i32
    return %c0_i32, %c0_i32_0 : i32, i32
  }
  func.func @transform_6(%arg0: i32) -> (i32, i32) {
    %c0_i32 = arith.constant 0 : i32
    %c0_i32_0 = arith.constant 0 : i32
    %c0_i32_1 = arith.constant 0 : i32
    return %c0_i32, %c0_i32_0 : i32, i32
  }
  func.func @transform_7(%arg0: i32) -> (i32, i32) {
    %c0_i32 = arith.constant 0 : i32
    %c0_i32_0 = arith.constant 0 : i32
    %c0_i32_1 = arith.constant 0 : i32
    return %c0_i32, %c0_i32_0 : i32, i32
  }
  func.func @transform_8(%arg0: i32) -> (i32, i32) {
    %c0_i32 = arith.constant 0 : i32
    %c0_i32_0 = arith.constant 0 : i32
    return %arg0, %c0_i32 : i32, i32
  }
}

</mosaic_0001>

<llo_original>
// kernel: tpu_custom_call.1
$region0: #{tpu_custom_call.1}
  #allocation0 [shape = 'u32[]', space=smem, size = 0x4, offset = 0x4, fixed_abs, tag = 'smem constant byte address 0x4 - core index']
  #allocation1 [shape = 'u32[72,128]{1,0:T(1,128)}', space=vmem, size = 0x9000, scoped, tag = 'internal scratch']
  %s0 = inlined_call_operand.vmem [shape: f32[16,32], index: 0, kind: input, shape index: {}]
  %s1 = inlined_call_operand.hbm [shape: bf16[16,16,64], index: 1, kind: input, shape index: {}]
  %s2 = inlined_call_operand.vmem [shape: s32[16,16], index: 2, kind: input, shape index: {}]
  %s3 = inlined_call_operand.vmem [shape: bf16[32,32], index: 3, kind: input, shape index: {}]
  %s4 = inlined_call_operand.vmem [shape: f32[1,32], index: 4, kind: input, shape index: {}]
  %s5 = inlined_call_operand.vmem [shape: bf16[64,32], index: 5, kind: input, shape index: {}]
  %s6 = inlined_call_operand.vmem [shape: f32[1,32], index: 6, kind: input, shape index: {}]
  %s7 = inlined_call_operand.vmem [shape: f32[1,32], index: 7, kind: input, shape index: {}]
  %s8 = inlined_call_operand.hbm [shape: f32[16,16], index: 8, kind: output, shape index: {}]
  %s9 = sld [smem:[#allocation0]]
  $region69: #{tpu_custom_call.1} parent=0
    _
  %s11 = ssub.s32 1, %s9
  %s12 = scalar_select 0, %s11, %s9
  $region1: #{tpu_custom_call.1} parent=0
    #allocation2 [shape = 'u8[65536]{0}', space=vmem, size = 0x10000, scoped, tag = 'input window, operand 1']
    #allocation3 [shape = 's32[2]{0}', space=sflag, size = 0x8, scoped, tag = 'scoped memory for tpu_custom_call.1']
    #allocation4 [shape = 's32[2]{0}', space=sflag, size = 0x8, scoped, tag = 'scoped memory for tpu_custom_call.1']
    #allocation5 [shape = 'u8[8192]{0}', space=vmem, size = 0x2000, scoped, tag = 'output window, operand 0']
    %13 = vsyncpa [#allocation3], 0
    %s14 = scalar_lea.sflag [#allocation3], 1
    %15 = vsyncpa %s14, 0
    %16 = vsyncpa [#allocation4], 0
    %s17 = scalar_lea.sflag [#allocation4], 1
    %18 = vsyncpa %s17, 0
    loop: start=0, step=1, limit=4
    $region2: #{tpu_custom_call.1} parent=1 // loop_pre_header
      _
    $region3: #{tpu_custom_call.1} parent=1 // loop_header
      %s20 = sphi 0, %s24
      %p21 = scmp.ge.s32.totalorder %s20, 4
      %s30 = sphi 0, %s32
      %s33 = sphi 0, %s30
      %s34 = sphi 0, %s33
      %s50 = sphi 0, %s34
      %s56 = sphi 0, %s58
      %s59 = sphi 0, %s56
      %s60 = sphi 0, %s59
      %s76 = sphi 0, %s60
      %s82 = sphi 0, %s84
      %s85 = sphi 0, %s82
      %s86 = sphi 0, %s85
      %s102 = sphi 0, %s86
      %s106 = sphi 0, %s106
      %s108 = sphi 0, %s106
      %s109 = sphi 0, %s108
      %s123 = sphi 0, %s109
      %s127 = sphi 0, %s127
      %s129 = sphi 0, %s127
      %s130 = sphi 0, %s129
      %s144 = sphi 0, %s130
      %s148 = sphi 0, %s148
      %s150 = sphi 0, %s148
      %s151 = sphi 0, %s150
      %s165 = sphi 0, %s151
      %s169 = sphi 0, %s169
      %s171 = sphi 0, %s169
      %s172 = sphi 0, %s171
      %s186 = sphi 0, %s172
      %s190 = sphi 0, %s190
      %s192 = sphi 0, %s190
      %s193 = sphi 0, %s192
      %s207 = sphi 0, %s193
      %s213 = sphi 0, %s215
      %s216 = sphi 0, %s213
      %s217 = sphi 0, %s216
      %s233 = sphi 0, %s217
    $region4: #{tpu_custom_call.1} parent=1 // loop_header_branch
      %23 = sbr.rel (%p21) target = $region8
    $region5: #{tpu_custom_call.1} parent=1 // loop_body
      %s25 = ssub.s32 %s20, 1
      %s26 = ssub.s32 %s20, 2
      %s27 = sadd.s32 %s20, 1
      %s28 = ssub.s32 %s20, %s27
      %p29 = scmp.eq.s32.totalorder %s28, 0
      %s31 = sadd.s32 %s30, 1
      %s32 = scalar_select %p29, %s30, %s31
      %p35 = pneg %p29
      %p36 = scmp.eq.s32.totalorder %s20, 1
      %p37 = por %p35, %p36
      %p38 = scmp.ne.s32.totalorder %s30, %s33
      %p39 = scmp.eq.s32.totalorder %s20, 0
      %p40 = por %p38, %p39
      %p41 = scmp.ne.s32.totalorder %s30, %s33
      %p42 = scmp.eq.s32.totalorder %s25, 1
      %p43 = por %p41, %p42
      %p44 = scmp.ne.s32.totalorder %s33, %s34
      %p45 = scmp.eq.s32.totalorder %s25, 0
      %p46 = por %p44, %p45
      %p47 = scmp.ne.s32.totalorder %s33, %s34
      %p48 = scmp.eq.s32.totalorder %s26, 1
      %p49 = por %p47, %p48
      %p51 = scmp.ne.s32.totalorder %s34, %s50
      %p52 = scmp.eq.s32.totalorder %s26, 0
      %p53 = por %p51, %p52
      %s54 = ssub.s32 %s20, %s27
      %p55 = scmp.eq.s32.totalorder %s54, 0
      %s57 = sadd.s32 %s56, 1
      %s58 = scalar_select %p55, %s56, %s57
      %p61 = pneg %p55
      %p62 = scmp.eq.s32.totalorder %s20, 1
      %p63 = por %p61, %p62
      %p64 = scmp.ne.s32.totalorder %s56, %s59
      %p65 = scmp.eq.s32.totalorder %s20, 0
      %p66 = por %p64, %p65
      %p67 = scmp.ne.s32.totalorder %s56, %s59
      %p68 = scmp.eq.s32.totalorder %s25, 1
      %p69 = por %p67, %p68
      %p70 = scmp.ne.s32.totalorder %s59, %s60
      %p71 = scmp.eq.s32.totalorder %s25, 0
      %p72 = por %p70, %p71
      %p73 = scmp.ne.s32.totalorder %s59, %s60
      %p74 = scmp.eq.s32.totalorder %s26, 1
      %p75 = por %p73, %p74
      %p77 = scmp.ne.s32.totalorder %s60, %s76
      %p78 = scmp.eq.s32.totalorder %s26, 0
      %p79 = por %p77, %p78
      %s80 = ssub.s32 %s20, %s27
      %p81 = scmp.eq.s32.totalorder %s80, 0
      %s83 = sadd.s32 %s82, 1
      %s84 = scalar_select %p81, %s82, %s83
      %p87 = pneg %p81
      %p88 = scmp.eq.s32.totalorder %s20, 1
      %p89 = por %p87, %p88
      %p90 = scmp.ne.s32.totalorder %s82, %s85
      %p91 = scmp.eq.s32.totalorder %s20, 0
      %p92 = por %p90, %p91
      %p93 = scmp.ne.s32.totalorder %s82, %s85
      %p94 = scmp.eq.s32.totalorder %s25, 1
      %p95 = por %p93, %p94
      %p96 = scmp.ne.s32.totalorder %s85, %s86
      %p97 = scmp.eq.s32.totalorder %s25, 0
      %p98 = por %p96, %p97
      %p99 = scmp.ne.s32.totalorder %s85, %s86
      %p100 = scmp.eq.s32.totalorder %s26, 1
      %p101 = por %p99, %p100
      %p103 = scmp.ne.s32.totalorder %s86, %s102
      %p104 = scmp.eq.s32.totalorder %s26, 0
      %p105 = por %p103, %p104
      %s107 = sadd.s32 %s106, 1
      %p110 = scmp.eq.s32.totalorder %s20, 1
      %p111 = scmp.ne.s32.totalorder %s106, %s108
      %p112 = scmp.eq.s32.totalorder %s20, 0
      %p113 = por %p111, %p112
      %p114 = scmp.ne.s32.totalorder %s106, %s108
      %p115 = scmp.eq.s32.totalorder %s25, 1
      %p116 = por %p114, %p115
      %p117 = scmp.ne.s32.totalorder %s108, %s109
      %p118 = scmp.eq.s32.totalorder %s25, 0
      %p119 = por %p117, %p118
      %p120 = scmp.ne.s32.totalorder %s108, %s109
      %p121 = scmp.eq.s32.totalorder %s26, 1
      %p122 = por %p120, %p121
      %p124 = scmp.ne.s32.totalorder %s109, %s123
      %p125 = scmp.eq.s32.totalorder %s26, 0
      %p126 = por %p124, %p125
      %s128 = sadd.s32 %s127, 1
      %p131 = scmp.eq.s32.totalorder %s20, 1
      %p132 = scmp.ne.s32.totalorder %s127, %s129
      %p133 = scmp.eq.s32.totalorder %s20, 0
      %p134 = por %p132, %p133
      %p135 = scmp.ne.s32.totalorder %s127, %s129
      %p136 = scmp.eq.s32.totalorder %s25, 1
      %p137 = por %p135, %p136
      %p138 = scmp.ne.s32.totalorder %s129, %s130
      %p139 = scmp.eq.s32.totalorder %s25, 0
      %p140 = por %p138, %p139
      %p141 = scmp.ne.s32.totalorder %s129, %s130
      %p142 = scmp.eq.s32.totalorder %s26, 1
      %p143 = por %p141, %p142
      %p145 = scmp.ne.s32.totalorder %s130, %s144
      %p146 = scmp.eq.s32.totalorder %s26, 0
      %p147 = por %p145, %p146
      %s149 = sadd.s32 %s148, 1
      %p152 = scmp.eq.s32.totalorder %s20, 1
      %p153 = scmp.ne.s32.totalorder %s148, %s150
      %p154 = scmp.eq.s32.totalorder %s20, 0
      %p155 = por %p153, %p154
      %p156 = scmp.ne.s32.totalorder %s148, %s150
      %p157 = scmp.eq.s32.totalorder %s25, 1
      %p158 = por %p156, %p157
      %p159 = scmp.ne.s32.totalorder %s150, %s151
      %p160 = scmp.eq.s32.totalorder %s25, 0
      %p161 = por %p159, %p160
      %p162 = scmp.ne.s32.totalorder %s150, %s151
      %p163 = scmp.eq.s32.totalorder %s26, 1
      %p164 = por %p162, %p163
      %p166 = scmp.ne.s32.totalorder %s151, %s165
      %p167 = scmp.eq.s32.totalorder %s26, 0
      %p168 = por %p166, %p167
      %s170 = sadd.s32 %s169, 1
      %p173 = scmp.eq.s32.totalorder %s20, 1
      %p174 = scmp.ne.s32.totalorder %s169, %s171
      %p175 = scmp.eq.s32.totalorder %s20, 0
      %p176 = por %p174, %p175
      %p177 = scmp.ne.s32.totalorder %s169, %s171
      %p178 = scmp.eq.s32.totalorder %s25, 1
      %p179 = por %p177, %p178
      %p180 = scmp.ne.s32.totalorder %s171, %s172
      %p181 = scmp.eq.s32.totalorder %s25, 0
      %p182 = por %p180, %p181
      %p183 = scmp.ne.s32.totalorder %s171, %s172
      %p184 = scmp.eq.s32.totalorder %s26, 1
      %p185 = por %p183, %p184
      %p187 = scmp.ne.s32.totalorder %s172, %s186
      %p188 = scmp.eq.s32.totalorder %s26, 0
      %p189 = por %p187, %p188
      %s191 = sadd.s32 %s190, 1
      %p194 = scmp.eq.s32.totalorder %s20, 1
      %p195 = scmp.ne.s32.totalorder %s190, %s192
      %p196 = scmp.eq.s32.totalorder %s20, 0
      %p197 = por %p195, %p196
      %p198 = scmp.ne.s32.totalorder %s190, %s192
      %p199 = scmp.eq.s32.totalorder %s25, 1
      %p200 = por %p198, %p199
      %p201 = scmp.ne.s32.totalorder %s192, %s193
      %p202 = scmp.eq.s32.totalorder %s25, 0
      %p203 = por %p201, %p202
      %p204 = scmp.ne.s32.totalorder %s192, %s193
      %p205 = scmp.eq.s32.totalorder %s26, 1
      %p206 = por %p204, %p205
      %p208 = scmp.ne.s32.totalorder %s193, %s207
      %p209 = scmp.eq.s32.totalorder %s26, 0
      %p210 = por %p208, %p209
      %s211 = ssub.s32 %s20, %s27
      %p212 = scmp.eq.s32.totalorder %s211, 0
      %s214 = sadd.s32 %s213, 1
      %s215 = scalar_select %p212, %s213, %s214
      %p218 = pneg %p212
      %p219 = scmp.eq.s32.totalorder %s20, 1
      %p220 = por %p218, %p219
      %p221 = scmp.ne.s32.totalorder %s213, %s216
      %p222 = scmp.eq.s32.totalorder %s20, 0
      %p223 = por %p221, %p222
      %p224 = scmp.ne.s32.totalorder %s213, %s216
      %p225 = scmp.eq.s32.totalorder %s25, 1
      %p226 = por %p224, %p225
      %p227 = scmp.ne.s32.totalorder %s216, %s217
      %p228 = scmp.eq.s32.totalorder %s25, 0
      %p229 = por %p227, %p228
      %p230 = scmp.ne.s32.totalorder %s216, %s217
      %p231 = scmp.eq.s32.totalorder %s26, 1
      %p232 = por %p230, %p231
      %p234 = scmp.ne.s32.totalorder %s217, %s233
      %p235 = scmp.eq.s32.totalorder %s26, 0
      %p236 = por %p234, %p235
      %p237 = scmp.le.s32.totalorder 1, %s20
      %p238 = scmp.lt.s32.totalorder %s20, 3
      %p239 = pnand %p237, %p238
      %p240 = pneg %p239
      // Predicated region
      $region9: #{tpu_custom_call.1} parent=5 // pred_check
        _
      $region10: #{tpu_custom_call.1} parent=5 // pred_check_branch
        %242 = sbr.rel (%p239) target = $region12
      $region11: #{tpu_custom_call.1} parent=5 // pred_region
        %s243 = ssub.s32 %s20, 1
        // Predicated region
        $region13: #{tpu_custom_call.1} parent=11 // pred_check
          %p244 = pneg %p119
        $region14: #{tpu_custom_call.1} parent=11 // pred_check_branch
          %246 = sbr.rel (%p244) target = $region16
        $region15: #{tpu_custom_call.1} parent=11 // pred_region
          _
        $region16: #{tpu_custom_call.1} parent=11 // pred_fallthru
          _
        // Predicated region
        $region17: #{tpu_custom_call.1} parent=11 // pred_check
          %p247 = pneg %p140
        $region18: #{tpu_custom_call.1} parent=11 // pred_check_branch
          %249 = sbr.rel (%p247) target = $region20
        $region19: #{tpu_custom_call.1} parent=11 // pred_region
          _
        $region20: #{tpu_custom_call.1} parent=11 // pred_fallthru
          _
        // Predicated region
        $region21: #{tpu_custom_call.1} parent=11 // pred_check
          %p250 = pneg %p161
        $region22: #{tpu_custom_call.1} parent=11 // pred_check_branch
          %252 = sbr.rel (%p250) target = $region24
        $region23: #{tpu_custom_call.1} parent=11 // pred_region
          _
        $region24: #{tpu_custom_call.1} parent=11 // pred_fallthru
          _
        // Predicated region
        $region25: #{tpu_custom_call.1} parent=11 // pred_check
          %p253 = pneg %p182
        $region26: #{tpu_custom_call.1} parent=11 // pred_check_branch
          %255 = sbr.rel (%p253) target = $region28
        $region27: #{tpu_custom_call.1} parent=11 // pred_region
          _
        $region28: #{tpu_custom_call.1} parent=11 // pred_fallthru
          _
        // Predicated region
        $region29: #{tpu_custom_call.1} parent=11 // pred_check
          %p256 = pneg %p203
        $region30: #{tpu_custom_call.1} parent=11 // pred_check_branch
          %258 = sbr.rel (%p256) target = $region32
        $region31: #{tpu_custom_call.1} parent=11 // pred_region
          _
        $region32: #{tpu_custom_call.1} parent=11 // pred_fallthru
          _
      $region12: #{tpu_custom_call.1} parent=5 // pred_fallthru
        _
      %p259 = scmp.lt.s32.totalorder %s20, 2
      // Predicated region
      $region33: #{tpu_custom_call.1} parent=5 // pred_check
        %p260 = pneg %p259
      $region34: #{tpu_custom_call.1} parent=5 // pred_check_branch
        %262 = sbr.rel (%p260) target = $region36
      $region35: #{tpu_custom_call.1} parent=5 // pred_region
        // Predicated region
        $region37: #{tpu_custom_call.1} parent=35 // pred_check
          %p263 = pneg %p40
        $region38: #{tpu_custom_call.1} parent=35 // pred_check_branch
          %265 = sbr.rel (%p263) target = $region40
        $region39: #{tpu_custom_call.1} parent=35 // pred_region
          %p266 = scmp.lt.s32.totalorder %s20, 1
          %s267 = scalar_select %p266, %s20, 1
          %s268 = smul.addr %s267, 8
          %s269 = scalar_lea.vmem %s0, %s268
        $region40: #{tpu_custom_call.1} parent=35 // pred_fallthru
          _
        // Predicated region
        $region41: #{tpu_custom_call.1} parent=35 // pred_check
          %p270 = pneg %p66
        $region42: #{tpu_custom_call.1} parent=35 // pred_check_branch
          %272 = sbr.rel (%p270) target = $region44
        $region43: #{tpu_custom_call.1} parent=35 // pred_region
          %s273 = sand.u32 %s56, 1
          %s274 = scalar_lea.sflag [#allocation3], %s273
          %s275 = sand.u32 %s56, 1
          %s276 = smul.addr %s275, 64
          %s277 = scalar_lea.vmem [#allocation2], %s276
          %s278 = smul.u32 8, %s20
          %280 = vsyncadd %s274, 0
          %s281 = smul.addr %s278, 2
          %s282 = smul.addr %s281, 4
          %s283 = scalar_lea.hbm %s1, %s282
          %s284 = sshll.u32 %s283, 4
          %s285 = int_to_ptr.hbm [resolvable:$true] %s284
          %s286 = sshll.u32 %s277, 4
          %s287 = int_to_ptr.vmem [resolvable:$true] %s286
          %292 = dma.hbm_to_vmem [thread:$0]  %s285, 1024, %s287, %s274, 64, 64, 4
        $region44: #{tpu_custom_call.1} parent=35 // pred_fallthru
          _
        // Predicated region
        $region45: #{tpu_custom_call.1} parent=35 // pred_check
          %p293 = pneg %p92
        $region46: #{tpu_custom_call.1} parent=35 // pred_check_branch
          %295 = sbr.rel (%p293) target = $region48
        $region47: #{tpu_custom_call.1} parent=35 // pred_region
          %p296 = scmp.lt.s32.totalorder %s20, 1
          %s297 = scalar_select %p296, %s20, 1
          %s298 = smul.addr %s297, 8
          %s299 = scalar_lea.vmem %s2, %s298
        $region48: #{tpu_custom_call.1} parent=35 // pred_fallthru
          _
      $region36: #{tpu_custom_call.1} parent=5 // pred_fallthru
        _
      %p300 = scmp.le.s32.totalorder 1, %s20
      %p301 = scmp.lt.s32.totalorder %s20, 3
      %p302 = pnand %p300, %p301
      %p303 = pneg %p302
      // Predicated region
      $region49: #{tpu_custom_call.1} parent=5 // pred_check
        _
      $region50: #{tpu_custom_call.1} parent=5 // pred_check_branch
        %305 = sbr.rel (%p302) target = $region52
      $region51: #{tpu_custom_call.1} parent=5 // pred_region
        %s306 = ssub.s32 %s20, 1
        %s307 = sand.u32 %s59, 1
        %s308 = scalar_lea.sflag [#allocation3], %s307
        %s309 = sand.u32 %s59, 1
        %s310 = smul.addr %s309, 64
        %s311 = scalar_lea.vmem [#allocation2], %s310
        // Predicated region
        $region53: #{tpu_custom_call.1} parent=51 // pred_check
          %p312 = pneg %p72
        $region54: #{tpu_custom_call.1} parent=51 // pred_check_branch
          %314 = sbr.rel (%p312) target = $region56
        $region55: #{tpu_custom_call.1} parent=51 // pred_region
          %316 = dma.done %s308, 1024
        $region56: #{tpu_custom_call.1} parent=51 // pred_fallthru
          _
        %p317 = scmp.lt.s32.totalorder %s25, 1
        %s318 = scalar_select %p317, %s25, 1
        %s319 = smul.addr %s318, 8
        %s320 = scalar_lea.vmem %s0, %s319
        %p321 = pneg %p46
        %p322 = pneg %p43
        %s323 = sand.u32 %s59, 1
        %s324 = scalar_lea.sflag [#allocation3], %s323
        %s325 = sand.u32 %s59, 1
        %s326 = smul.addr %s325, 64
        %s327 = scalar_lea.vmem [#allocation2], %s326
        %p328 = pneg %p72
        %p329 = pneg %p69
        %p330 = scmp.lt.s32.totalorder %s25, 1
        %s331 = scalar_select %p330, %s25, 1
        %s332 = smul.addr %s331, 8
        %s333 = scalar_lea.vmem %s2, %s332
        %p334 = pneg %p98
        %p335 = pneg %p95
        %p336 = pneg %p119
        %p337 = pneg %p116
        %p338 = pneg %p140
        %p339 = pneg %p137
        %p340 = pneg %p161
        %p341 = pneg %p158
        %p342 = pneg %p182
        %p343 = pneg %p179
        %p344 = pneg %p203
        %p345 = pneg %p200
        %p346 = pneg %p229
        %p347 = pneg %p226
        %s348 = sand.u32 %s216, 1
        %s349 = scalar_lea.sflag [#allocation4], %s348
        %s350 = sand.u32 %s216, 1
        %s351 = smul.addr %s350, 8
        %s352 = scalar_lea.vmem [#allocation5], %s351
        %p353 = scmp.lt.s32.totalorder %s25, 1
        %s354 = scalar_select %p353, %s25, 1
        %s355 = smul.addr %s354, 8
        %s356 = scalar_lea.vmem %s0, %s355
        %s357 = smul.u32 8, %s25
        %p358 = scmp.lt.s32.totalorder %s25, 1
        %s359 = scalar_select %p358, %s25, 1
        %s360 = smul.addr %s359, 8
        %s361 = scalar_lea.vmem %s2, %s360
        %v363 = vld [vmem:[%s356] sm:$0xff]
        %v364 = vpack.c.bf16 %v363, %v363
        %v365 = vld [vmem:[%s3] sm:$0xf]
        %v366 = vld [vmem:[%s3 + $0x4] sm:$0xf]
        %v367 = vld [vmem:[%s3 + $0x8] sm:$0xf]
        %v368 = vld [vmem:[%s3 + $0xc] sm:$0xf]
        %v369 = vld [vmem:[%s4] sm:$0x1]
        %v371 = vperm.slane %v369, 0
        %v377 = vunpack.c.l.b16 %v365
        %v378 = vunpack.c.l.b16 %v366
        %v379 = vunpack.c.l.b16 %v367
        %v380 = vunpack.c.l.b16 %v368
        %v381 = vpack.c.b16 %v378, %v377
        %v382 = vpack.c.b16 %v380, %v379
        %vm385 = vcmask 261120
        %v387 = vsel %vm385, %v364, 0
        %389 = vmatpush.bf16.msra.mxu0 0
        %390 = vmatpush.bf16.msra.mxu0 0
        %391 = vmatpush.bf16.msra.mxu0 0
        %392 = vmatpush.bf16.msra.mxu0 0
        %393 = vmatpush.bf16.msra.mxu0 0
        %394 = vmatpush.bf16.msra.mxu0 0
        %395 = vmatpush.bf16.msra.mxu0 %v382
        %396 = vmatpush.bf16.msra.mxu0 %v381
        %397 = vmatmul.bf16.gmra.mxu0 %v387
        %v398 = vpop.f32.mrf.mxu0
        %v399 = vadd.f32 %v371, %v398
        %v400 = vpop.f32.mrf.mxu0
        %401 = vdwg.mxu0
        %v402 = vld [vmem:[%s311] sm:$0xf]
        %v403 = vld [vmem:[%s311 + $0x4] sm:$0xf]
        %v404 = vld [vmem:[%s311 + $0x8] sm:$0xf]
        %v405 = vld [vmem:[%s311 + $0xc] sm:$0xf]
        %v406 = vld [vmem:[%s311 + $0x10] sm:$0xf]
        %v407 = vld [vmem:[%s311 + $0x14] sm:$0xf]
        %v408 = vld [vmem:[%s311 + $0x18] sm:$0xf]
        %v409 = vld [vmem:[%s311 + $0x1c] sm:$0xf]
        %v410 = vld [vmem:[%s311 + $0x20] sm:$0xf]
        %v411 = vld [vmem:[%s311 + $0x24] sm:$0xf]
        %v412 = vld [vmem:[%s311 + $0x28] sm:$0xf]
        %v413 = vld [vmem:[%s311 + $0x2c] sm:$0xf]
        %v414 = vld [vmem:[%s311 + $0x30] sm:$0xf]
        %v415 = vld [vmem:[%s311 + $0x34] sm:$0xf]
        %v416 = vld [vmem:[%s311 + $0x38] sm:$0xf]
        %v417 = vld [vmem:[%s311 + $0x3c] sm:$0xf]
        %v418 = vld [vmem:[%s5] sm:$0xf]
        %v419 = vld [vmem:[%s5 + $0x4] sm:$0xf]
        %v420 = vld [vmem:[%s5 + $0x8] sm:$0xf]
        %v421 = vld [vmem:[%s5 + $0xc] sm:$0xf]
        %v422 = vld [vmem:[%s5 + $0x10] sm:$0xf]
        %v423 = vld [vmem:[%s5 + $0x14] sm:$0xf]
        %v424 = vld [vmem:[%s5 + $0x18] sm:$0xf]
        %v425 = vld [vmem:[%s5 + $0x1c] sm:$0xf]
        %v442 = vunpack.c.l.b16 %v402
        %v443 = vunpack.c.l.b16 %v403
        %v444 = vunpack.c.l.b16 %v404
        %v445 = vunpack.c.l.b16 %v405
        %v446 = vunpack.c.l.b16 %v406
        %v447 = vunpack.c.l.b16 %v407
        %v448 = vunpack.c.l.b16 %v408
        %v449 = vunpack.c.l.b16 %v409
        %v450 = vunpack.c.l.b16 %v410
        %v451 = vunpack.c.l.b16 %v411
        %v452 = vunpack.c.l.b16 %v412
        %v453 = vunpack.c.l.b16 %v413
        %v454 = vunpack.c.l.b16 %v414
        %v455 = vunpack.c.l.b16 %v415
        %v456 = vunpack.c.l.b16 %v416
        %v457 = vunpack.c.l.b16 %v417
        %v458 = vpack.c.b16 %v443, %v442
        %v459 = vpack.c.b16 %v445, %v444
        %v460 = vpack.c.b16 %v447, %v446
        %v461 = vpack.c.b16 %v449, %v448
        %v462 = vpack.c.b16 %v451, %v450
        %v463 = vpack.c.b16 %v453, %v452
        %v464 = vpack.c.b16 %v455, %v454
        %v465 = vpack.c.b16 %v457, %v456
        %v474 = vunpack.c.l.b16 %v418
        %v475 = vunpack.c.l.b16 %v419
        %v476 = vunpack.c.l.b16 %v420
        %v477 = vunpack.c.l.b16 %v421
        %v478 = vunpack.c.l.b16 %v422
        %v479 = vunpack.c.l.b16 %v423
        %v480 = vunpack.c.l.b16 %v424
        %v481 = vunpack.c.l.b16 %v425
        %v482 = vpack.c.b16 %v475, %v474
        %v483 = vpack.c.b16 %v477, %v476
        %v484 = vpack.c.b16 %v479, %v478
        %v485 = vpack.c.b16 %v481, %v480
        %vm490 = vcmask 523264
        %v492 = vsel %vm490, %v458, 0
        %v495 = vsel %vm490, %v459, 0
        %v498 = vsel %vm490, %v460, 0
        %v501 = vsel %vm490, %v461, 0
        %v504 = vsel %vm490, %v462, 0
        %v507 = vsel %vm490, %v463, 0
        %v510 = vsel %vm490, %v464, 0
        %v513 = vsel %vm490, %v465, 0
        %515 = vmatpush.bf16.msra.mxu0 0
        %516 = vmatpush.bf16.msra.mxu0 0
        %517 = vmatpush.bf16.msra.mxu0 0
        %518 = vmatpush.bf16.msra.mxu0 0
        %519 = vmatpush.bf16.msra.mxu0 %v485
        %520 = vmatpush.bf16.msra.mxu0 %v484
        %521 = vmatpush.bf16.msra.mxu0 %v483
        %522 = vmatpush.bf16.msra.mxu0 %v482
        %523 = vmatmul.bf16.gmra.mxu0 %v492
        %v524 = vpop.f32.mrf.mxu0
        %v525 = vadd.f32 0.0, %v524
        %v526 = vpop.f32.mrf.mxu0
        %v527 = vadd.f32 0.0, %v526
        %528 = vmatmul.bf16.gmra.mxu0 %v495
        %v529 = vpop.f32.mrf.mxu0
        %v530 = vadd.f32 0.0, %v529
        %v531 = vpop.f32.mrf.mxu0
        %v532 = vadd.f32 0.0, %v531
        %533 = vmatmul.bf16.gmra.mxu0 %v498
        %v534 = vpop.f32.mrf.mxu0
        %v535 = vadd.f32 0.0, %v534
        %v536 = vpop.f32.mrf.mxu0
        %v537 = vadd.f32 0.0, %v536
        %538 = vmatmul.bf16.gmra.mxu0 %v501
        %v539 = vpop.f32.mrf.mxu0
        %v540 = vadd.f32 0.0, %v539
        %v541 = vpop.f32.mrf.mxu0
        %v542 = vadd.f32 0.0, %v541
        %543 = vmatmul.bf16.gmra.mxu0 %v504
        %v544 = vpop.f32.mrf.mxu0
        %v545 = vadd.f32 0.0, %v544
        %v546 = vpop.f32.mrf.mxu0
        %v547 = vadd.f32 0.0, %v546
        %548 = vmatmul.bf16.gmra.mxu0 %v507
        %v549 = vpop.f32.mrf.mxu0
        %v550 = vadd.f32 0.0, %v549
        %v551 = vpop.f32.mrf.mxu0
        %v552 = vadd.f32 0.0, %v551
        %553 = vmatmul.bf16.gmra.mxu0 %v510
        %v554 = vpop.f32.mrf.mxu0
        %v555 = vadd.f32 0.0, %v554
        %v556 = vpop.f32.mrf.mxu0
        %v557 = vadd.f32 0.0, %v556
        %558 = vmatmul.bf16.gmra.mxu0 %v513
        %v559 = vpop.f32.mrf.mxu0
        %v560 = vadd.f32 0.0, %v559
        %v561 = vpop.f32.mrf.mxu0
        %v562 = vadd.f32 0.0, %v561
        %563 = vdwg.mxu0
        %v564 = vld [vmem:[%s6] sm:$0x1]
        %v566 = vperm.slane %v564, 0
        %v568 = vadd.f32 %v525, %v566
        %v569 = vadd.f32 %v527, %v566
        %v570 = vadd.f32 %v530, %v566
        %v571 = vadd.f32 %v532, %v566
        %v572 = vadd.f32 %v535, %v566
        %v573 = vadd.f32 %v537, %v566
        %v574 = vadd.f32 %v540, %v566
        %v575 = vadd.f32 %v542, %v566
        %v576 = vadd.f32 %v545, %v566
        %v577 = vadd.f32 %v547, %v566
        %v578 = vadd.f32 %v550, %v566
        %v579 = vadd.f32 %v552, %v566
        %v580 = vadd.f32 %v555, %v566
        %v581 = vadd.f32 %v557, %v566
        %v582 = vadd.f32 %v560, %v566
        %v583 = vadd.f32 %v562, %v566
        %v585 = vrot.slane %v399, 1
        %v586 = vrot.slane %v399, 2
        %v587 = vrot.slane %v399, 3
        %v588 = vrot.slane %v399, 4
        %v589 = vrot.slane %v399, 5
        %v590 = vrot.slane %v399, 6
        %v591 = vrot.slane %v399, 7
        %v592 = vperm.slane %v399, 0
        %v593 = vperm.slane %v585, 0
        %v594 = vperm.slane %v586, 0
        %v595 = vperm.slane %v587, 0
        %v596 = vperm.slane %v588, 0
        %v597 = vperm.slane %v589, 0
        %v598 = vperm.slane %v590, 0
        %v599 = vperm.slane %v591, 0
        %v608 = vadd.f32 %v568, %v592
        %v609 = vadd.f32 %v569, %v592
        %v610 = vadd.f32 %v570, %v593
        %v611 = vadd.f32 %v571, %v593
        %v612 = vadd.f32 %v572, %v594
        %v613 = vadd.f32 %v573, %v594
        %v614 = vadd.f32 %v574, %v595
        %v615 = vadd.f32 %v575, %v595
        %v616 = vadd.f32 %v576, %v596
        %v617 = vadd.f32 %v577, %v596
        %v618 = vadd.f32 %v578, %v597
        %v619 = vadd.f32 %v579, %v597
        %v620 = vadd.f32 %v580, %v598
        %v621 = vadd.f32 %v581, %v598
        %v622 = vadd.f32 %v582, %v599
        %v623 = vadd.f32 %v583, %v599
        %v624 = vtanh.pop %v608
        %v625 = vtanh.pop %v609
        %v626 = vtanh.pop %v610
        %v627 = vtanh.pop %v611
        %v628 = vtanh.pop %v612
        %v629 = vtanh.pop %v613
        %v630 = vtanh.pop %v614
        %v631 = vtanh.pop %v615
        %v632 = vtanh.pop %v616
        %v633 = vtanh.pop %v617
        %v634 = vtanh.pop %v618
        %v635 = vtanh.pop %v619
        %v636 = vtanh.pop %v620
        %v637 = vtanh.pop %v621
        %v638 = vtanh.pop %v622
        %v639 = vtanh.pop %v623
        %v640 = vld [vmem:[%s7] sm:$0x1]
        %v642 = vperm.slane %v640, 0
        %v644 = vmul.f32 %v624, %v642
        %v645 = vmul.f32 %v625, %v642
        %v646 = vmul.f32 %v626, %v642
        %v647 = vmul.f32 %v627, %v642
        %v648 = vmul.f32 %v628, %v642
        %v649 = vmul.f32 %v629, %v642
        %v650 = vmul.f32 %v630, %v642
        %v651 = vmul.f32 %v631, %v642
        %v652 = vmul.f32 %v632, %v642
        %v653 = vmul.f32 %v633, %v642
        %v654 = vmul.f32 %v634, %v642
        %v655 = vmul.f32 %v635, %v642
        %v656 = vmul.f32 %v636, %v642
        %v657 = vmul.f32 %v637, %v642
        %v658 = vmul.f32 %v638, %v642
        %v659 = vmul.f32 %v639, %v642
        %v660 = vsel %vm385, %v644, 0.0
        %661 = vadd.xlane.f32.xlu0 %v660
        %v662 = vpop.xlane.xlu0 %661
        %v663 = vsel %vm385, %v645, 0.0
        %664 = vadd.xlane.f32.xlu0 %v663
        %v665 = vpop.xlane.xlu0 %664
        %v666 = vsel %vm385, %v646, 0.0
        %667 = vadd.xlane.f32.xlu0 %v666
        %v668 = vpop.xlane.xlu0 %667
        %v669 = vsel %vm385, %v647, 0.0
        %670 = vadd.xlane.f32.xlu0 %v669
        %v671 = vpop.xlane.xlu0 %670
        %v672 = vsel %vm385, %v648, 0.0
        %673 = vadd.xlane.f32.xlu0 %v672
        %v674 = vpop.xlane.xlu0 %673
        %v675 = vsel %vm385, %v649, 0.0
        %676 = vadd.xlane.f32.xlu0 %v675
        %v677 = vpop.xlane.xlu0 %676
        %v678 = vsel %vm385, %v650, 0.0
        %679 = vadd.xlane.f32.xlu0 %v678
        %v680 = vpop.xlane.xlu0 %679
        %v681 = vsel %vm385, %v651, 0.0
        %682 = vadd.xlane.f32.xlu0 %v681
        %v683 = vpop.xlane.xlu0 %682
        %v684 = vsel %vm385, %v652, 0.0
        %685 = vadd.xlane.f32.xlu0 %v684
        %v686 = vpop.xlane.xlu0 %685
        %v687 = vsel %vm385, %v653, 0.0
        %688 = vadd.xlane.f32.xlu0 %v687
        %v689 = vpop.xlane.xlu0 %688
        %v690 = vsel %vm385, %v654, 0.0
        %691 = vadd.xlane.f32.xlu0 %v690
        %v692 = vpop.xlane.xlu0 %691
        %v693 = vsel %vm385, %v655, 0.0
        %694 = vadd.xlane.f32.xlu0 %v693
        %v695 = vpop.xlane.xlu0 %694
        %v696 = vsel %vm385, %v656, 0.0
        %697 = vadd.xlane.f32.xlu0 %v696
        %v698 = vpop.xlane.xlu0 %697
        %v699 = vsel %vm385, %v657, 0.0
        %700 = vadd.xlane.f32.xlu0 %v699
        %v701 = vpop.xlane.xlu0 %700
        %v702 = vsel %vm385, %v658, 0.0
        %703 = vadd.xlane.f32.xlu0 %v702
        %v704 = vpop.xlane.xlu0 %703
        %v705 = vsel %vm385, %v659, 0.0
        %706 = vadd.xlane.f32.xlu0 %v705
        %v707 = vpop.xlane.xlu0 %706
        %v708 = vld [vmem:[%s361] sm:$0xff]
        %vm709 = vcmp.ne.s32.totalorder %v708, 0
        %v726 = vlaneseq
        %v727 = vand.u32 %v726, 127
        %v728 = vperm.slane %v662, %v727
        %v729 = vadd.s32 %v727, 4294967288
        %v730 = vperm.slane %v665, %v729
        %vm731 = vcmask 130112
        %v732 = vsel %vm731, %v730, %v728
        %v733 = vperm.slane %v668, %v727
        %v734 = vperm.slane %v671, %v729
        %v735 = vsel %vm731, %v734, %v733
        %v736 = vperm.slane %v674, %v727
        %v737 = vperm.slane %v677, %v729
        %v738 = vsel %vm731, %v737, %v736
        %v739 = vperm.slane %v680, %v727
        %v740 = vperm.slane %v683, %v729
        %v741 = vsel %vm731, %v740, %v739
        %v742 = vperm.slane %v686, %v727
        %v743 = vperm.slane %v689, %v729
        %v744 = vsel %vm731, %v743, %v742
        %v745 = vperm.slane %v692, %v727
        %v746 = vperm.slane %v695, %v729
        %v747 = vsel %vm731, %v746, %v745
        %v748 = vperm.slane %v698, %v727
        %v749 = vperm.slane %v701, %v729
        %v750 = vsel %vm731, %v749, %v748
        %v751 = vperm.slane %v704, %v727
        %v752 = vperm.slane %v707, %v729
        %v753 = vsel %vm731, %v752, %v751
        %vm754 = vcmask 1041409
        %v755 = vsel %vm754, %v735, %v732
        %vm756 = vcmask 1042434
        %v757 = vsel %vm756, %v738, %v755
        %vm758 = vcmask 1043459
        %v759 = vsel %vm758, %v741, %v757
        %vm760 = vcmask 1044484
        %v761 = vsel %vm760, %v744, %v759
        %vm762 = vcmask 1045509
        %v763 = vsel %vm762, %v747, %v761
        %vm764 = vcmask 1046534
        %v765 = vsel %vm764, %v750, %v763
        %vm766 = vcmask 1047559
        %v767 = vsel %vm766, %v753, %v765
        %v769 = vsel %vm709, -1e+10, %v767
        %vm770 = vcmask 130048
        %v771 = vsel %vm770, %v769, -inf
        %772 = vmax.xlane.f32.xlu0 %v771
        %v773 = vpop.xlane.xlu0 %772
        %v774 = vsub.f32 %v769, %v773
        %v775 = vmul.f32 %v774, 1.442695
        %v776 = vpow.pop %v775
        %v777 = vsel %vm770, %v776, 0.0
        %778 = vadd.xlane.f32.xlu0 %v777
        %v779 = vpop.xlane.xlu0 %778
        %v780 = vrcp.pop %v779
        %v781 = vmul.f32 %v779, %v780
        %v782 = vsub.f32 1.0, %v781
        %v783 = vmul.f32 %v780, %v782
        %v784 = vadd.f32 %v780, %v783
        %vm785 = vweird.f32 %v779
        %vm786 = vweird.f32 %v780
        %vm787 = vmor %vm785, %vm786
        %v788 = vsel %vm787, %v780, %v784
        %v789 = vand.u32 2147483647, %v779
        %vm790 = vcmp.eq.f32.partialorder %v789, 8.507059e+37
        %v791 = vand.u32 %v779, 2147483648
        %v792 = vor.u32 1.1754944e-38, %v791
        %v793 = vsel %vm790, %v792, %v788
        %v794 = vmul.f32 %v776, %v793
        %795 = vst.msk [vmem:[%s352] sm:$0xff] %vm770, %v794
        %s796 = sand.u32 %s216, 1
        %s797 = scalar_lea.sflag [#allocation4], %s796
        %s798 = sand.u32 %s216, 1
        %s799 = smul.addr %s798, 8
        %s800 = scalar_lea.vmem [#allocation5], %s799
        // Predicated region
        $region57: #{tpu_custom_call.1} parent=51 // pred_check
          %p801 = pneg %p226
        $region58: #{tpu_custom_call.1} parent=51 // pred_check_branch
          %803 = sbr.rel (%p801) target = $region60
        $region59: #{tpu_custom_call.1} parent=51 // pred_region
          %805 = vsyncadd %s797, 0
          %s806 = smul.addr %s25, 8
          %s807 = scalar_lea.hbm %s8, %s806
          %s809 = sshll.u32 %s800, 4
          %s810 = int_to_ptr.vmem [resolvable:$true] %s809
          %s811 = sshll.u32 %s807, 4
          %s812 = int_to_ptr.hbm [resolvable:$true] %s811
          %814 = dma.vmem_to_hbm [thread:$0]  %s810, 128, %s812, %s797
        $region60: #{tpu_custom_call.1} parent=51 // pred_fallthru
          _
      $region52: #{tpu_custom_call.1} parent=5 // pred_fallthru
        _
      %p815 = scmp.le.s32.totalorder 2, %s20
      // Predicated region
      $region61: #{tpu_custom_call.1} parent=5 // pred_check
        %p816 = pneg %p815
      $region62: #{tpu_custom_call.1} parent=5 // pred_check_branch
        %818 = sbr.rel (%p816) target = $region64
      $region63: #{tpu_custom_call.1} parent=5 // pred_region
        %s819 = ssub.s32 %s20, 2
        // Predicated region
        $region65: #{tpu_custom_call.1} parent=63 // pred_check
          %p820 = pneg %p232
        $region66: #{tpu_custom_call.1} parent=63 // pred_check_branch
          %822 = sbr.rel (%p820) target = $region68
        $region67: #{tpu_custom_call.1} parent=63 // pred_region
          %s823 = sand.u32 %s217, 1
          %s824 = scalar_lea.sflag [#allocation4], %s823
          %s825 = sand.u32 %s217, 1
          %s826 = smul.addr %s825, 8
          %s827 = scalar_lea.vmem [#allocation5], %s826
          %829 = dma.done %s824, 128
        $region68: #{tpu_custom_call.1} parent=63 // pred_fallthru
          _
      $region64: #{tpu_custom_call.1} parent=5 // pred_fallthru
        _
    $region6: #{tpu_custom_call.1} parent=1 // loop_footer
      %s24 = sadd.s32 1, %s20
    $region7: #{tpu_custom_call.1} parent=1 // loop_footer_branch
      %19 = sbr.rel target = $region3
    $region8: #{tpu_custom_call.1} parent=1 // loop_exit
      _
    %830 = vsyncpa [#allocation3], 1
    %s831 = scalar_lea.sflag [#allocation3], 1
    %832 = vsyncpa %s831, 1
    %833 = vsyncpa [#allocation4], 1
    %s834 = scalar_lea.sflag [#allocation4], 1
    %835 = vsyncpa %s834, 1

</llo_original>
